<compile_context>
chip_gen: v5e
topology: v5e:2x2
jax: 0.10.0
libtpu: 0.0.40
codegen_flags: <defaults>
</compile_context>

<pallas_src>
import jax
import jax.numpy as jnp
from jax.experimental import pallas as pl
from jax.experimental.pallas import tpu as pltpu


def _round_up(n: int, m: int) -> int:
    return ((n + m - 1) // m) * m


def _pra_kernel(rid_ref, x_ref, cls_ref, out_ref):
    # rid_ref : SMEM (1,) int32    — consumed by the classifier index_map only.
    # x_ref   : VMEM (F+1, tb)     — row 0 = rid values, rows 1..F = features;
    #                                batch on the lane axis (dense).
    # cls_ref : VMEM (1, 1, F+1)   — selected classifier row, leading 0 weight.
    # out_ref : VMEM (1, tb)       — lane-dense score tile.
    del rid_ref
    w = cls_ref[0]                     # (1, F+1); w[0, 0] == 0 kills the rid row
    xt = x_ref[...]                    # (F+1, tb)
    scores = jnp.dot(w, xt, preferred_element_type=jnp.float32)   # (1, tb)
    out_ref[...] = jax.nn.sigmoid(scores)


def mhyao_pra_forward_featmajor(x_fb, classifiers, *, rid=None, block_b=8192):
    """Optimized entry point (feature-major layout).

    x_fb        : (F+1, B) float32 — row 0 holds the relation id, rows 1..F the
                  features; batch on the lane axis.
    classifiers : (R, F) float32.
    rid         : optional int — pass it to skip the tiny device slice of
                  x_fb[0, 0]; if None it is read from x_fb (module semantics).
    Returns     : (B,) float32 sigmoid scores.
    """
    Fp1, B = x_fb.shape
    R, F = classifiers.shape
    assert Fp1 == F + 1

    # rid: clip to a valid row so the data-dependent classifier DMA can never
    # go out of bounds.
    if rid is None:
        rid_arr = jnp.clip(x_fb[0, 0].astype(jnp.int32), 0, R - 1).reshape((1,))
    else:
        rid_arr = jnp.clip(jnp.asarray(rid, jnp.int32), 0, R - 1).reshape((1,))

    # Zero-pad the classifier rows with a leading 0 so the whole (F+1, tb) tile
    # is contracted without the lane/sublane-misaligned `1:` drop.
    # (In a real model this padded parameter would be materialized once.)
    cls_pad = jnp.pad(classifiers, ((0, 0), (1, 0))).reshape(R, 1, Fp1)

    # Lane-aligned batch tiles, ceil-div grid (ragged tail masked by Pallas).
    block_b = _round_up(min(block_b, _round_up(B, 128)), 128)
    grid = (pl.cdiv(B, block_b),)

    out = pl.pallas_call(
        _pra_kernel,
        out_shape=jax.ShapeDtypeStruct((1, B), jnp.float32),
        grid_spec=pltpu.PrefetchScalarGridSpec(
            num_scalar_prefetch=1,
            grid=grid,
            in_specs=[
                # (F+1, block_b): features on sublanes, batch dense on lanes.
                pl.BlockSpec((Fp1, block_b), lambda i, rid_ref: (0, i)),
                # Only the selected classifier row ((F+1) * 4 bytes) is DMA'd,
                # once, and stays resident across all batch tiles.
                pl.BlockSpec((1, 1, Fp1), lambda i, rid_ref: (rid_ref[0], 0, 0)),
            ],
            # Lane-dense (1, tb) output tile (batch on the lane axis).
            out_specs=pl.BlockSpec((1, block_b), lambda i, rid_ref: (0, i)),
        ),
        compiler_params=pltpu.CompilerParams(
            dimension_semantics=("parallel",)),   # batch tiles shard on v7x's 2 TCs
    )(rid_arr, x_fb, cls_pad)
    return out[0]                                 # (B,)


def mhyao_pra_forward(batch_features_with_rid, classifiers, *, rid=None,
                      block_b=8192):
    """Module-compatible entry: x is (1, B, F+1) exactly like the PyTorch
    forward.  The transpose to the feature-major layout is wrapper-side layout
    plumbing; callers that can produce (F+1, B) upstream should call
    mhyao_pra_forward_featmajor directly and skip it."""
    x = batch_features_with_rid
    assert x.ndim == 3 and x.shape[0] == 1
    x_fb = jnp.transpose(x[0])                    # (F+1, B)
    return mhyao_pra_forward_featmajor(x_fb, classifiers, rid=rid,
                                       block_b=block_b)


if __name__ == "__main__":
    # Small shapes consistent with the module.
    num_relations = 4
    meta_path_feature_size = 32
    batch_size = 8

    key = jax.random.PRNGKey(0)
    k_cls, k_feat, k_feat2 = jax.random.split(key, 3)

    # Deterministic parameter init (matches torch.randn((R, F)) shape).
    classifiers = jax.random.normal(
        k_cls, (num_relations, meta_path_feature_size), dtype=jnp.float32)

    # Build the input tensor exactly like the module expects:
    # (1, batch_size, feature_size + 1); column 0 holds the relation id.
    rid_value = 2
    feats = jax.random.normal(
        k_feat, (batch_size, meta_path_feature_size), dtype=jnp.float32)
    rid_col = jnp.full((batch_size, 1), float(rid_value), dtype=jnp.float32)
    batch_features_with_rid = jnp.concatenate([rid_col, feats], axis=1)[None]

    out = jax.block_until_ready(
        mhyao_pra_forward(batch_features_with_rid, classifiers))
    ref = jax.nn.sigmoid(feats @ classifiers[rid_value, :])
    assert out.shape == (batch_size,)
    assert jnp.allclose(out, ref, atol=1e-5, rtol=1e-5)

    # Second check: ragged multi-tile grid + caller-supplied rid on the
    # optimized feature-major layout (B=300 with block_b=256 -> 2 tiles,
    # second tile partially out of bounds and masked by Pallas).
    b2 = 300
    feats2 = jax.random.normal(
        k_feat2, (b2, meta_path_feature_size), dtype=jnp.float32)
    x2_fb = jnp.concatenate(
        [jnp.full((1, b2), float(rid_value), dtype=jnp.float32), feats2.T],
        axis=0)                                                    # (F+1, B2)
    out2 = jax.block_until_ready(
        mhyao_pra_forward_featmajor(x2_fb, classifiers, rid=rid_value,
                                    block_b=256))
    ref2 = jax.nn.sigmoid(feats2 @ classifiers[rid_value, :])
    assert out2.shape == (b2,)
    assert jnp.allclose(out2, ref2, atol=1e-5, rtol=1e-5)

    print("KERNEL_OK")
</pallas_src>

<mosaic_0001>
module attributes {stable_mosaic.version = 11 : i64} {
  func.func @_pra_kernel(%arg0: i32, %arg1: memref<1xi32, #tpu.memory_space<smem>>, %arg2: memref<33x128xf32, #tpu.memory_space<vmem>>, %arg3: memref<1x1x33xf32, #tpu.memory_space<vmem>>, %arg4: memref<1x128xf32, #tpu.memory_space<vmem>>) attributes {dimension_semantics = [#tpu.dimension_semantics<parallel>], iteration_bounds = array<i64: 1>, scalar_prefetch = 1 : i64, scratch_operands = 0 : i64, tpu.core_type = #tpu.core_type<tc>, window_params = [{transform_indices = @transform_0, window_bounds = array<i64: 33, 128>}, {transform_indices = @transform_1, window_bounds = array<i64: 1, 1, 33>}, {transform_indices = @transform_2, window_bounds = array<i64: 1, 128>}]} {
    %c0 = arith.constant 0 : index
    %c0_0 = arith.constant 0 : index
    %c0_1 = arith.constant 0 : index
    %0 = vector.load %arg3[%c0, %c0_0, %c0_1] : memref<1x1x33xf32, #tpu.memory_space<vmem>>, vector<1x1x33xf32>
    %1 = vector.shape_cast %0 : vector<1x1x33xf32> to vector<1x33xf32>
    %c0_2 = arith.constant 0 : index
    %c0_3 = arith.constant 0 : index
    %2 = vector.load %arg2[%c0_2, %c0_3] : memref<33x128xf32, #tpu.memory_space<vmem>>, vector<33x128xf32>
    %cst = arith.constant dense<0.000000e+00> : vector<1x128xf32>
    %3 = tpu.matmul %1, %2, %cst {dimension_numbers = #tpu.dot_dimension_numbers<[1], [0], [0], [1], [0, 0, 1, 1], [], []>} : vector<1x33xf32>, vector<33x128xf32>, vector<1x128xf32> -> vector<1x128xf32>
    %4 = arith.negf %3 : vector<1x128xf32>
    %5 = math.exp %4 : vector<1x128xf32>
    %cst_4 = arith.constant 1.000000e+00 : f32
    %6 = vector.broadcast %cst_4 : f32 to vector<1x128xf32>
    %7 = arith.addf %6, %5 : vector<1x128xf32>
    %8 = arith.divf %6, %7 : vector<1x128xf32>
    %c0_5 = arith.constant 0 : index
    %c0_6 = arith.constant 0 : index
    %9 = vector.load %arg4[%c0_5, %c0_6] : memref<1x128xf32, #tpu.memory_space<vmem>>, vector<1x128xf32>
    tpu.vector_store %arg4[%c0_5, %c0_6], %8 {strides = array<i32>} : memref<1x128xf32, #tpu.memory_space<vmem>>, vector<1x128xf32>,
    return
  }
  func.func @transform_0(%arg0: i32, %arg1: memref<1xi32, #tpu.memory_space<smem>>) -> (i32, i32) {
    %c0_i32 = arith.constant 0 : i32
    %c0_i32_0 = arith.constant 0 : i32
    return %c0_i32, %arg0 : i32, i32
  }
  func.func @transform_1(%arg0: i32, %arg1: memref<1xi32, #tpu.memory_space<smem>>) -> (i32, i32, i32) {
    %c0 = arith.constant 0 : index
    %0 = memref.load %arg1[%c0] : memref<1xi32, #tpu.memory_space<smem>>
    %c0_i32 = arith.constant 0 : i32
    %c0_i32_0 = arith.constant 0 : i32
    %c0_i32_1 = arith.constant 0 : i32
    return %0, %c0_i32, %c0_i32_0 : i32, i32, i32
  }
  func.func @transform_2(%arg0: i32, %arg1: memref<1xi32, #tpu.memory_space<smem>>) -> (i32, i32) {
    %c0_i32 = arith.constant 0 : i32
    %c0_i32_0 = arith.constant 0 : i32
    return %c0_i32, %arg0 : i32, i32
  }
}

</mosaic_0001>

<llo_original>
// kernel: tpu_custom_call.1
$region0: #{tpu_custom_call.1}
  #allocation0 [shape = 'u32[]', space=smem, size = 0x4, offset = 0x4, fixed_abs, tag = 'smem constant byte address 0x4 - core index']
  #allocation1 [shape = 'u32[72,128]{1,0:T(1,128)}', space=vmem, size = 0x9000, scoped, tag = 'internal scratch']
  #allocation2 [shape = 's32[1]{0}', space=sflag, size = 0x4, scoped, tag = 'scoped memory for tpu_custom_call.1']
  #allocation3 [shape = 's32[1]{0:T(128)S(6)}', space=smem, size = 0x200, scoped, tag = 'prefetched SMEM operand 0']
  %s0 = inlined_call_operand.<no memory space> [shape: s32[1], index: 0, kind: input, shape index: {}]
  %s1 = inlined_call_operand.vmem [shape: f32[33,8], index: 1, kind: input, shape index: {}]
  %s2 = inlined_call_operand.vmem [shape: f32[4,1,33], index: 2, kind: input, shape index: {}]
  %s3 = inlined_call_operand.hbm [shape: f32[1,8], index: 3, kind: output, shape index: {}]
  %s4 = sld [smem:[#allocation0]]
  $region18: #{tpu_custom_call.1} parent=0
    _
  %s6 = ssub.s32 1, %s4
  %s7 = scalar_select 0, %s6, %s4
  %8 = sst [smem:[#allocation3]] %s0
  $region1: #{tpu_custom_call.1} parent=0
    #allocation4 [shape = 'u8[512]{0}', space=vmem, size = 0x400, scoped, tag = 'output window, operand 0, single buffered']
    #allocation5 [shape = 's32[1]{0}', space=sflag, size = 0x4, scoped, tag = 'scoped memory for tpu_custom_call.1']
    %9 = vsyncpa [#allocation5], 0
    // Predicated region
    $region2: #{tpu_custom_call.1} parent=1 // pred_check
      _
    $region3: #{tpu_custom_call.1} parent=1 // pred_check_branch
      %11 = sbr.rel (0) target = $region5
    $region4: #{tpu_custom_call.1} parent=1 // pred_region
      _
    $region5: #{tpu_custom_call.1} parent=1 // pred_fallthru
      _
    // Predicated region
    $region6: #{tpu_custom_call.1} parent=1 // pred_check
      _
    $region7: #{tpu_custom_call.1} parent=1 // pred_check_branch
      %13 = sbr.rel (0) target = $region9
    $region8: #{tpu_custom_call.1} parent=1 // pred_region
      %s14 = sld [smem:[#allocation3]]
      %p15 = scmp.lt.s32.totalorder %s14, 3
      %s16 = scalar_select %p15, %s14, 3
      %s17 = scalar_lea.vmem %s2, %s16
      %s18 = sld [smem:[#allocation3]]
    $region9: #{tpu_custom_call.1} parent=1 // pred_fallthru
      _
    %s19 = sld [smem:[#allocation3]]
    %p20 = scmp.lt.s32.totalorder %s19, 3
    %s21 = scalar_select %p20, %s19, 3
    %s22 = scalar_lea.vmem %s2, %s21
    %s23 = sld [smem:[#allocation3]]
    %p24 = scmp.lt.s32.totalorder %s23, 3
    %s25 = scalar_select %p24, %s23, 3
    %s26 = scalar_lea.vmem %s2, %s25
    %s27 = sld [smem:[#allocation3]]
    %v28 = vld [vmem:[%s26] sm:$0x1]
    %v29 = vld [vmem:[%s1] sm:$0xff]
    %v30 = vld [vmem:[%s1 + $0x8] sm:$0xff]
    %v31 = vld [vmem:[%s1 + $0x10] sm:$0xff]
    %v32 = vld [vmem:[%s1 + $0x18] sm:$0xff]
    %v33 = vld [vmem:[%s1 + $0x20] sm:$0x1]
    %vm34 = vcmask 269312
    %v36 = vsel %vm34, %v28, 0
    %vm38 = vcmask 1040384
    %v40 = vsel %vm38, %v33, 0
    %42 = vmatpush.msra.mxu0 0.0
    %43 = vmatpush.msra.mxu0 0.0
    %44 = vmatpush.msra.mxu0 0.0
    %45 = vmatpush.msra.mxu0 0.0
    %46 = vmatpush.msra.mxu0 0.0
    %47 = vmatpush.msra.mxu0 0.0
    %48 = vmatpush.msra.mxu0 0.0
    %49 = vmatpush.msra.mxu0 0.0
    %50 = vmatpush.msra.mxu0 0.0
    %51 = vmatpush.msra.mxu0 0.0
    %52 = vmatpush.msra.mxu0 0.0
    %53 = vmatpush.msra.mxu0 %v40
    %54 = vmatpush.msra.mxu0 %v32
    %55 = vmatpush.msra.mxu0 %v31
    %56 = vmatpush.msra.mxu0 %v30
    %57 = vmatpush.msra.mxu0 %v29
    %58 = vmatmul.f32.gmra.mxu0 %v36
    %v59 = vpop.f32.mrf.mxu0
    %v60 = vadd.f32 0.0, %v59
    %61 = vdwg.mxu0
    %v62 = vxor.u32 %v60, 2147483648
    %v63 = vmul.f32 %v62, 1.442695
    %v64 = vpow.pop %v63
    %v65 = vadd.f32 %v64, 1.0
    %v66 = vrcp.pop %v65
    %v67 = vmul.f32 %v65, %v66
    %v68 = vsub.f32 1.0, %v67
    %v69 = vmul.f32 %v66, %v68
    %v70 = vadd.f32 %v66, %v69
    %vm71 = vweird.f32 %v65
    %vm72 = vweird.f32 %v66
    %vm73 = vmor %vm71, %vm72
    %v74 = vsel %vm73, %v66, %v70
    %v75 = vand.u32 2147483647, %v65
    %vm76 = vcmp.eq.f32.partialorder %v75, 8.507059e+37
    %v77 = vand.u32 %v65, 2147483648
    %v78 = vor.u32 1.1754944e-38, %v77
    %v79 = vsel %vm76, %v78, %v74
    %v80 = vmul.f32 1.0, %v79
    %81 = vst [vmem:[#allocation4] sm:$0x1] %v80
    // Predicated region
    $region10: #{tpu_custom_call.1} parent=1 // pred_check
      _
    $region11: #{tpu_custom_call.1} parent=1 // pred_check_branch
      %83 = sbr.rel (0) target = $region13
    $region12: #{tpu_custom_call.1} parent=1 // pred_region
      %85 = vsyncadd [#allocation5], 0
      %s87 = sshll.u32 [#allocation4], 4
      %s88 = int_to_ptr.vmem [resolvable:$true] %s87
      %s89 = sshll.u32 %s3, 4
      %s90 = int_to_ptr.hbm [resolvable:$true] %s89
      %92 = dma.vmem_to_hbm [thread:$0]  %s88, 16, %s90, [#allocation5]
    $region13: #{tpu_custom_call.1} parent=1 // pred_fallthru
      _
    // Predicated region
    $region14: #{tpu_custom_call.1} parent=1 // pred_check
      _
    $region15: #{tpu_custom_call.1} parent=1 // pred_check_branch
      %94 = sbr.rel (0) target = $region17
    $region16: #{tpu_custom_call.1} parent=1 // pred_region
      %96 = dma.done [#allocation5], 16
    $region17: #{tpu_custom_call.1} parent=1 // pred_fallthru
      _
    %97 = vsyncpa [#allocation5], 1

</llo_original>
